<compile_context>
chip_gen: v7x
topology: tpu7x:2x2x1
jax: 0.10.0
libtpu: 0.0.40
codegen_flags: <defaults>
</compile_context>

<pallas_src>
import jax
import jax.numpy as jnp
from jax.experimental import pallas as pl
from jax.experimental.pallas import tpu as pltpu

_LANES = 128
_MAX_TILE_ROWS = 2048  # (2048, 128) f32 = 1 MiB per buffer


def _round_up(n, m):
    return ((n + m - 1) // m) * m


def _wlogabs_sum_kernel(d_ref, s_ref, out_ref, acc_ref):
    """Accumulates sum(scale * log(|d| + 0.5)) over the whole slab."""
    @pl.when(pl.program_id(0) == 0)
    def _():
        acc_ref[...] = jnp.zeros_like(acc_ref)
        out_ref[...] = jnp.zeros_like(out_ref)

    # (T, 128) * (T, 1): abs/add/mul on VALU, log on EUP; no per-step XLU.
    acc_ref[...] += jnp.log(jnp.abs(d_ref[...]) + 0.5) * s_ref[...]

    @pl.when(pl.program_id(0) == pl.num_programs(0) - 1)
    def _():
        out_ref[...] += jnp.sum(acc_ref[...])


def _fused_weighted_logabs_mean(segments):
    """sum_s w_s * mean(log(|seg_s| + 0.5)) in a single pallas_call.

    segments: list of (array, weight).  Each band is flattened to a
    (rows, 128) lane-dense slab (tail padded with 0.5 so pads contribute 0)
    and paired with a per-row scale = weight / band_size.
    """
    data_rows = []
    scale_rows = []
    for arr, weight in segments:
        n = arr.size
        flat = arr.reshape(-1).astype(jnp.float32)
        rows = _round_up(n, _LANES) // _LANES
        pad = rows * _LANES - n
        if pad:
            flat = jnp.pad(flat, (0, pad), constant_values=0.5)  # log(1) == 0
        data_rows.append(flat.reshape(rows, _LANES))
        scale_rows.append(jnp.full((rows, 1), weight / n, dtype=jnp.float32))

    data = jnp.concatenate(data_rows, axis=0)
    scale = jnp.concatenate(scale_rows, axis=0)

    total_rows = data.shape[0]
    tile_rows = min(_MAX_TILE_ROWS, _round_up(total_rows, 8))
    padded_rows = _round_up(total_rows, tile_rows)
    if padded_rows > total_rows:
        data = jnp.pad(data, ((0, padded_rows - total_rows), (0, 0)),
                       constant_values=0.5)  # still contributes exactly 0
        scale = jnp.pad(scale, ((0, padded_rows - total_rows), (0, 0)))

    out = pl.pallas_call(
        _wlogabs_sum_kernel,
        out_shape=jax.ShapeDtypeStruct((1, 1), jnp.float32),
        grid_spec=pltpu.PrefetchScalarGridSpec(
            num_scalar_prefetch=0,
            grid=(padded_rows // tile_rows,),
            in_specs=[
                pl.BlockSpec((tile_rows, _LANES), lambda i: (i, 0)),
                pl.BlockSpec((tile_rows, 1), lambda i: (i, 0)),
            ],
            out_specs=pl.BlockSpec((1, 1), lambda i: (0, 0)),
            scratch_shapes=[pltpu.VMEM((tile_rows, _LANES), jnp.float32)],
        ),
        compiler_params=pltpu.CompilerParams(
            dimension_semantics=("arbitrary",)),
    )(data, scale)
    return out[0, 0]


def _dwt(x):
    # TODO(synk): `dwt` is imported elsewhere in wavelet_ssim_loss.py and not
    # shown in the snippet; we assume the standard single-level Haar DWT
    # returning (LL, concat(HL, LH) along channels, HH) with the usual /2
    # scaling.  x is NCHW with even H, W.
    # TODO(synk): the stride-2 band extraction stays as plain-JAX glue; fusing
    # it into the Pallas kernel (sublane/lane swizzles) is a further win.
    x01 = x[:, :, 0::2, :] * 0.5
    x02 = x[:, :, 1::2, :] * 0.5
    a = x01[:, :, :, 0::2]
    b = x02[:, :, :, 0::2]
    c = x01[:, :, :, 1::2]
    d = x02[:, :, :, 1::2]
    ll = a + b + c + d
    hl = -a - b + c + d
    lh = -a + b - c + d
    hh = a - b - c + d
    return ll, jnp.concatenate([hl, lh], axis=1), hh


def wdepth_forward(x, y, r=0.7):
    """Pallas-backed equivalent of Wdepth.forward (r is unused, as in torch)."""
    # Haar DWT is linear: DWT(x)_band - DWT(y)_band == DWT(x - y)_band,
    # so the whole loss is computed from the single diff tensor.
    d = x.astype(jnp.float32) - y.astype(jnp.float32)
    l, m, h = (1.0, 1.0, 1.0)
    segments = [(d, 1.0)]
    band = d
    for _ in range(4):
        band, d1, d2 = _dwt(band)
        segments.append((d1, 2.0 * m))
        segments.append((d2, 1.0 * h))
    segments.append((band, 1.0 * l))
    return _fused_weighted_logabs_mean(segments)


if __name__ == "__main__":
    key = jax.random.PRNGKey(0)
    kx, ky = jax.random.split(key)
    # H = W = 16 survives 4 halvings (16 -> 8 -> 4 -> 2 -> 1).
    x = jax.random.normal(kx, (2, 4, 16, 16), dtype=jnp.float32)
    y = jax.random.normal(ky, (2, 4, 16, 16), dtype=jnp.float32)

    out = jax.jit(wdepth_forward)(x, y)
    out = jax.block_until_ready(out)

    # Pure-JAX reference mirroring the torch module (same dwt assumption).
    def _ref(x, y):
        loss = jnp.mean(jnp.log(jnp.abs(x - y) + 0.5))
        l, m, h = (1.0, 1.0, 1.0)
        x0 = y0 = None
        for _ in range(4):
            x0, x1, x2 = _dwt(x)
            y0, y1, y2 = _dwt(y)
            loss = (loss
                    + jnp.mean(jnp.log(jnp.abs(x1 - y1) + 0.5)) * 2.0 * m
                    + jnp.mean(jnp.log(jnp.abs(x2 - y2) + 0.5)) * h)
            x, y = x0, y0
        return loss + jnp.mean(jnp.log(jnp.abs(x0 - y0) + 0.5)) * l

    ref = _ref(x, y)
    assert jnp.allclose(out, ref, rtol=2e-5, atol=1e-5), (out, ref)
    print("KERNEL_OK")
</pallas_src>

<mosaic_0001>
module attributes {stable_mosaic.version = 11 : i64} {
  func.func @_wlogabs_sum_kernel(%arg0: i32, %arg1: memref<40x128xf32, #tpu.memory_space<vmem>>, %arg2: memref<40x1xf32, #tpu.memory_space<vmem>>, %arg3: memref<1x1xf32, #tpu.memory_space<vmem>>, %arg4: memref<40x128xf32, #tpu.memory_space<vmem>>) attributes {dimension_semantics = [#tpu.dimension_semantics<arbitrary>], iteration_bounds = array<i64: 1>, scalar_prefetch = 0 : i64, scratch_operands = 1 : i64, tpu.core_type = #tpu.core_type<tc>, window_params = [{transform_indices = @transform_0, window_bounds = array<i64: 40, 128>}, {transform_indices = @transform_1, window_bounds = array<i64: 40, 1>}, {pipeline_mode = #tpu.pipeline_mode<synchronous>, transform_indices = @transform_2, window_bounds = array<i64: 1, 1>}]} {
    %c0_i32 = arith.constant 0 : i32
    %0 = arith.cmpi eq, %arg0, %c0_i32 : i32
    %1 = arith.extui %0 : i1 to i32
    %c0_i32_0 = arith.constant 0 : i32
    %2 = arith.cmpi ne, %1, %c0_i32_0 : i32
    scf.if %2 {
      %cst_10 = arith.constant 0.000000e+00 : f32
      %17 = vector.broadcast %cst_10 : f32 to vector<40x128xf32>
      %c0_11 = arith.constant 0 : index
      %c0_12 = arith.constant 0 : index
      %18 = vector.load %arg4[%c0_11, %c0_12] : memref<40x128xf32, #tpu.memory_space<vmem>>, vector<40x128xf32>
      tpu.vector_store %arg4[%c0_11, %c0_12], %17 {strides = array<i32>} : memref<40x128xf32, #tpu.memory_space<vmem>>, vector<40x128xf32>,
      %cst_13 = arith.constant 0.000000e+00 : f32
      %19 = vector.broadcast %cst_13 : f32 to vector<1x1xf32>
      %c0_14 = arith.constant 0 : index
      %c0_15 = arith.constant 0 : index
      %20 = vector.load %arg3[%c0_14, %c0_15] : memref<1x1xf32, #tpu.memory_space<vmem>>, vector<1x1xf32>
      tpu.vector_store %arg3[%c0_14, %c0_15], %19 {strides = array<i32>} : memref<1x1xf32, #tpu.memory_space<vmem>>, vector<1x1xf32>,
    } else {
    }
    %c0 = arith.constant 0 : index
    %c0_1 = arith.constant 0 : index
    %3 = vector.load %arg4[%c0, %c0_1] : memref<40x128xf32, #tpu.memory_space<vmem>>, vector<40x128xf32>
    %c0_2 = arith.constant 0 : index
    %c0_3 = arith.constant 0 : index
    %4 = vector.load %arg1[%c0_2, %c0_3] : memref<40x128xf32, #tpu.memory_space<vmem>>, vector<40x128xf32>
    %5 = math.absf %4 : vector<40x128xf32>
    %cst = arith.constant 5.000000e-01 : f32
    %6 = vector.broadcast %cst : f32 to vector<40x128xf32>
    %7 = arith.addf %5, %6 : vector<40x128xf32>
    %8 = math.log %7 : vector<40x128xf32>
    %c0_4 = arith.constant 0 : index
    %c0_5 = arith.constant 0 : index
    %9 = vector.load %arg2[%c0_4, %c0_5] : memref<40x1xf32, #tpu.memory_space<vmem>>, vector<40x1xf32>
    %10 = vector.broadcast %9 : vector<40x1xf32> to vector<40x128xf32>
    %11 = arith.mulf %8, %10 : vector<40x128xf32>
    %12 = arith.addf %3, %11 : vector<40x128xf32>
    %c0_6 = arith.constant 0 : index
    %c0_7 = arith.constant 0 : index
    %13 = vector.load %arg4[%c0_6, %c0_7] : memref<40x128xf32, #tpu.memory_space<vmem>>, vector<40x128xf32>
    tpu.vector_store %arg4[%c0_6, %c0_7], %12 {strides = array<i32>} : memref<40x128xf32, #tpu.memory_space<vmem>>, vector<40x128xf32>,
    %c0_i32_8 = arith.constant 0 : i32
    %14 = arith.cmpi eq, %arg0, %c0_i32_8 : i32
    %15 = arith.extui %14 : i1 to i32
    %c0_i32_9 = arith.constant 0 : i32
    %16 = arith.cmpi ne, %15, %c0_i32_9 : i32
    scf.if %16 {
      %c0_10 = arith.constant 0 : index
      %c0_11 = arith.constant 0 : index
      %17 = vector.load %arg3[%c0_10, %c0_11] : memref<1x1xf32, #tpu.memory_space<vmem>>, vector<1x1xf32>
      %c0_12 = arith.constant 0 : index
      %c0_13 = arith.constant 0 : index
      %18 = vector.load %arg4[%c0_12, %c0_13] : memref<40x128xf32, #tpu.memory_space<vmem>>, vector<40x128xf32>
      %19 = vector.shape_cast %18 : vector<40x128xf32> to vector<1x40x128xf32>
      %cst_14 = arith.constant dense<0.000000e+00> : vector<1xf32>
      %20 = vector.multi_reduction <add>, %19, %cst_14 [1, 2] : vector<1x40x128xf32> to vector<1xf32>
      %21 = vector.shape_cast %20 : vector<1xf32> to vector<1x1x1xf32>
      %22 = vector.extract %21[0, 0, 0] : f32 from vector<1x1x1xf32>
      %23 = vector.broadcast %22 : f32 to vector<1x1xf32>
      %24 = arith.addf %17, %23 : vector<1x1xf32>
      %c0_15 = arith.constant 0 : index
      %c0_16 = arith.constant 0 : index
      %25 = vector.load %arg3[%c0_15, %c0_16] : memref<1x1xf32, #tpu.memory_space<vmem>>, vector<1x1xf32>
      tpu.vector_store %arg3[%c0_15, %c0_16], %24 {strides = array<i32>} : memref<1x1xf32, #tpu.memory_space<vmem>>, vector<1x1xf32>,
    } else {
    }
    return
  }
  func.func @transform_0(%arg0: i32) -> (i32, i32) {
    %c0_i32 = arith.constant 0 : i32
    %c0_i32_0 = arith.constant 0 : i32
    return %arg0, %c0_i32 : i32, i32
  }
  func.func @transform_1(%arg0: i32) -> (i32, i32) {
    %c0_i32 = arith.constant 0 : i32
    %c0_i32_0 = arith.constant 0 : i32
    return %arg0, %c0_i32 : i32, i32
  }
  func.func @transform_2(%arg0: i32) -> (i32, i32) {
    %c0_i32 = arith.constant 0 : i32
    %c0_i32_0 = arith.constant 0 : i32
    %c0_i32_1 = arith.constant 0 : i32
    return %c0_i32, %c0_i32_0 : i32, i32
  }
}

</mosaic_0001>

<llo_original>
// kernel: sub.17
$region0: #{sub.17}
  #allocation4 [shape = 's32[1]{0}', space=sflag, size = 0x4, scoped, tag = 'scoped memory for sub.17']
  %s0 = inlined_call_operand.hbm [shape: f32[2,4,16,16], index: 0, kind: input, shape index: {}]
  %s1 = inlined_call_operand.hbm [shape: f32[2,4,16,16], index: 1, kind: input, shape index: {}]
  %s2 = inlined_call_operand.vmem [shape: f32[2,4,16,16], index: 2, kind: output, shape index: {}]
  $region1: #{sub.17} parent=0
    #allocation0 [shape = 'u8[65536]{0}', space=vmem, size = 0x10000, scoped, tag = 'operand span for operand 0']
    #allocation1 [shape = 's32[1]{0}', space=sflag, size = 0x4, scoped, tag = 'scoped memory for sub.17']
    #allocation2 [shape = 'u8[65536]{0}', space=vmem, size = 0x10000, scoped, tag = 'operand span for operand 1']
    #allocation3 [shape = 's32[1]{0}', space=sflag, size = 0x4, scoped, tag = 'scoped memory for sub.17']
    %3 = vsyncpa [#allocation1], 0
    %4 = vsyncpa [#allocation3], 0
    %s6 = ssub.s32 2048, 2048
    %7 = vsyncadd [#allocation1], %s6
    %s8 = sshll.u32 [#allocation0], 4
    %s9 = int_to_ptr.vmem [resolvable:$true] %s8
    %14 = dma.hbm_to_vmem [thread:$0]  %s0, 2048, %s9, [#allocation1], 128, 128, 8
    %s16 = ssub.s32 2048, 2048
    %17 = vsyncadd [#allocation3], %s16
    %s18 = sshll.u32 [#allocation2], 4
    %s19 = int_to_ptr.vmem [resolvable:$true] %s18
    %24 = dma.hbm_to_vmem [thread:$0]  %s1, 2048, %s19, [#allocation3], 128, 128, 8
    %25 = dma.done [#allocation1], 2048
    %26 = dma.done [#allocation3], 2048
    %v27 = vld [vmem:[#allocation0] sm:$0xff]
    %v28 = vld [vmem:[#allocation2] sm:$0xff]
    %29 = xla_tuple %v27, %v28
    %30 = xla_tuple %29
    %v31 = vsub.f32 %v27, %v28
    %32 = xla_tuple %v31
    %33 = vst [vmem:[%s2] sm:$0xff] %v31
    %s34 = scalar_lea.vmem [#allocation0], 64
    %v35 = vld [vmem:[%s34] sm:$0xff]
    %s36 = scalar_lea.vmem [#allocation2], 64
    %v37 = vld [vmem:[%s36] sm:$0xff]
    %38 = xla_tuple %v35, %v37
    %39 = xla_tuple %38
    %v40 = vsub.f32 %v35, %v37
    %41 = xla_tuple %v40
    %s42 = scalar_lea.vmem %s2, 64
    %43 = vst [vmem:[%s42] sm:$0xff] %v40
    %s44 = scalar_lea.vmem [#allocation0], 16
    %v45 = vld [vmem:[%s44] sm:$0xff]
    %s46 = scalar_lea.vmem [#allocation2], 16
    %v47 = vld [vmem:[%s46] sm:$0xff]
    %48 = xla_tuple %v45, %v47
    %49 = xla_tuple %48
    %v50 = vsub.f32 %v45, %v47
    %51 = xla_tuple %v50
    %s52 = scalar_lea.vmem %s2, 16
    %53 = vst [vmem:[%s52] sm:$0xff] %v50
    %s54 = scalar_lea.vmem [#allocation0], 80
    %v55 = vld [vmem:[%s54] sm:$0xff]
    %s56 = scalar_lea.vmem [#allocation2], 80
    %v57 = vld [vmem:[%s56] sm:$0xff]
    %58 = xla_tuple %v55, %v57
    %59 = xla_tuple %58
    %v60 = vsub.f32 %v55, %v57
    %61 = xla_tuple %v60
    %s62 = scalar_lea.vmem %s2, 80
    %63 = vst [vmem:[%s62] sm:$0xff] %v60
    %s64 = scalar_lea.vmem [#allocation0], 32
    %v65 = vld [vmem:[%s64] sm:$0xff]
    %s66 = scalar_lea.vmem [#allocation2], 32
    %v67 = vld [vmem:[%s66] sm:$0xff]
    %68 = xla_tuple %v65, %v67
    %69 = xla_tuple %68
    %v70 = vsub.f32 %v65, %v67
    %71 = xla_tuple %v70
    %s72 = scalar_lea.vmem %s2, 32
    %73 = vst [vmem:[%s72] sm:$0xff] %v70
    %s74 = scalar_lea.vmem [#allocation0], 96
    %v75 = vld [vmem:[%s74] sm:$0xff]
    %s76 = scalar_lea.vmem [#allocation2], 96
    %v77 = vld [vmem:[%s76] sm:$0xff]
    %78 = xla_tuple %v75, %v77
    %79 = xla_tuple %78
    %v80 = vsub.f32 %v75, %v77
    %81 = xla_tuple %v80
    %s82 = scalar_lea.vmem %s2, 96
    %83 = vst [vmem:[%s82] sm:$0xff] %v80
    %s84 = scalar_lea.vmem [#allocation0], 48
    %v85 = vld [vmem:[%s84] sm:$0xff]
    %s86 = scalar_lea.vmem [#allocation2], 48
    %v87 = vld [vmem:[%s86] sm:$0xff]
    %88 = xla_tuple %v85, %v87
    %89 = xla_tuple %88
    %v90 = vsub.f32 %v85, %v87
    %91 = xla_tuple %v90
    %s92 = scalar_lea.vmem %s2, 48
    %93 = vst [vmem:[%s92] sm:$0xff] %v90
    %s94 = scalar_lea.vmem [#allocation0], 112
    %v95 = vld [vmem:[%s94] sm:$0xff]
    %s96 = scalar_lea.vmem [#allocation2], 112
    %v97 = vld [vmem:[%s96] sm:$0xff]
    %98 = xla_tuple %v95, %v97
    %99 = xla_tuple %98
    %v100 = vsub.f32 %v95, %v97
    %101 = xla_tuple %v100
    %s102 = scalar_lea.vmem %s2, 112
    %103 = vst [vmem:[%s102] sm:$0xff] %v100
    %s104 = scalar_lea.vmem [#allocation0], 8
    %v105 = vld [vmem:[%s104] sm:$0xff]
    %s106 = scalar_lea.vmem [#allocation2], 8
    %v107 = vld [vmem:[%s106] sm:$0xff]
    %108 = xla_tuple %v105, %v107
    %109 = xla_tuple %108
    %v110 = vsub.f32 %v105, %v107
    %111 = xla_tuple %v110
    %s112 = scalar_lea.vmem %s2, 8
    %113 = vst [vmem:[%s112] sm:$0xff] %v110
    %s114 = scalar_lea.vmem [#allocation0], 72
    %v115 = vld [vmem:[%s114] sm:$0xff]
    %s116 = scalar_lea.vmem [#allocation2], 72
    %v117 = vld [vmem:[%s116] sm:$0xff]
    %118 = xla_tuple %v115, %v117
    %119 = xla_tuple %118
    %v120 = vsub.f32 %v115, %v117
    %121 = xla_tuple %v120
    %s122 = scalar_lea.vmem %s2, 72
    %123 = vst [vmem:[%s122] sm:$0xff] %v120
    %s124 = scalar_lea.vmem [#allocation0], 24
    %v125 = vld [vmem:[%s124] sm:$0xff]
    %s126 = scalar_lea.vmem [#allocation2], 24
    %v127 = vld [vmem:[%s126] sm:$0xff]
    %128 = xla_tuple %v125, %v127
    %129 = xla_tuple %128
    %v130 = vsub.f32 %v125, %v127
    %131 = xla_tuple %v130
    %s132 = scalar_lea.vmem %s2, 24
    %133 = vst [vmem:[%s132] sm:$0xff] %v130
    %s134 = scalar_lea.vmem [#allocation0], 88
    %v135 = vld [vmem:[%s134] sm:$0xff]
    %s136 = scalar_lea.vmem [#allocation2], 88
    %v137 = vld [vmem:[%s136] sm:$0xff]
    %138 = xla_tuple %v135, %v137
    %139 = xla_tuple %138
    %v140 = vsub.f32 %v135, %v137
    %141 = xla_tuple %v140
    %s142 = scalar_lea.vmem %s2, 88
    %143 = vst [vmem:[%s142] sm:$0xff] %v140
    %s144 = scalar_lea.vmem [#allocation0], 40
    %v145 = vld [vmem:[%s144] sm:$0xff]
    %s146 = scalar_lea.vmem [#allocation2], 40
    %v147 = vld [vmem:[%s146] sm:$0xff]
    %148 = xla_tuple %v145, %v147
    %149 = xla_tuple %148
    %v150 = vsub.f32 %v145, %v147
    %151 = xla_tuple %v150
    %s152 = scalar_lea.vmem %s2, 40
    %153 = vst [vmem:[%s152] sm:$0xff] %v150
    %s154 = scalar_lea.vmem [#allocation0], 104
    %v155 = vld [vmem:[%s154] sm:$0xff]
    %s156 = scalar_lea.vmem [#allocation2], 104
    %v157 = vld [vmem:[%s156] sm:$0xff]
    %158 = xla_tuple %v155, %v157
    %159 = xla_tuple %158
    %v160 = vsub.f32 %v155, %v157
    %161 = xla_tuple %v160
    %s162 = scalar_lea.vmem %s2, 104
    %163 = vst [vmem:[%s162] sm:$0xff] %v160
    %s164 = scalar_lea.vmem [#allocation0], 56
    %v165 = vld [vmem:[%s164] sm:$0xff]
    %s166 = scalar_lea.vmem [#allocation2], 56
    %v167 = vld [vmem:[%s166] sm:$0xff]
    %168 = xla_tuple %v165, %v167
    %169 = xla_tuple %168
    %v170 = vsub.f32 %v165, %v167
    %171 = xla_tuple %v170
    %s172 = scalar_lea.vmem %s2, 56
    %173 = vst [vmem:[%s172] sm:$0xff] %v170
    %s174 = scalar_lea.vmem [#allocation0], 120
    %v175 = vld [vmem:[%s174] sm:$0xff]
    %s176 = scalar_lea.vmem [#allocation2], 120
    %v177 = vld [vmem:[%s176] sm:$0xff]
    %178 = xla_tuple %v175, %v177
    %179 = xla_tuple %178
    %v180 = vsub.f32 %v175, %v177
    %181 = xla_tuple %v180
    %s182 = scalar_lea.vmem %s2, 120
    %183 = vst [vmem:[%s182] sm:$0xff] %v180
    %184 = vsyncpa [#allocation1], 1
    %185 = vsyncpa [#allocation3], 1

// kernel: wdepth_forward.1
$region0: #{wdepth_forward.1}
  #allocation0 [shape = 'u32[]', space=smem, size = 0x4, offset = 0x4, fixed_abs, tag = 'smem constant byte address 0x4 - core index']
  #allocation1 [shape = 'u32[144,128]{1,0:T(1,128)}', space=vmem, size = 0x12000, scoped, tag = 'internal scratch']
  #allocation2 [shape = 'f32[40,128]{1,0:T(8,128)}', space=vmem, size = 0x5000, scoped, tag = 'scratch operand']
  %s0 = inlined_call_operand.vmem [shape: f32[40,128], index: 0, kind: input, shape index: {}]
  %s1 = inlined_call_operand.vmem [shape: f32[40,1], index: 1, kind: input, shape index: {}]
  %s2 = inlined_call_operand.hbm [shape: f32[1,1], index: 2, kind: output, shape index: {}]
  %s3 = sld [smem:[#allocation0]]
  $region26: #{wdepth_forward.1} parent=0
    _
  %s5 = ssub.s32 1, %s3
  %s6 = scalar_select 0, %s5, %s3
  $region1: #{wdepth_forward.1} parent=0
    #allocation3 [shape = 'u8[512]{0}', space=vmem, size = 0x400, scoped, tag = 'output window, operand 0, single buffered']
    #allocation4 [shape = 's32[1]{0}', space=sflag, size = 0x4, scoped, tag = 'scoped memory for wdepth_forward.1']
    %7 = vsyncpa [#allocation4], 0
    // Predicated region
    $region2: #{wdepth_forward.1} parent=1 // pred_check
      _
    $region3: #{wdepth_forward.1} parent=1 // pred_check_branch
      %9 = sbr.rel (0) target = $region5
    $region4: #{wdepth_forward.1} parent=1 // pred_region
      _
    $region5: #{wdepth_forward.1} parent=1 // pred_fallthru
      _
    // Predicated region
    $region6: #{wdepth_forward.1} parent=1 // pred_check
      _
    $region7: #{wdepth_forward.1} parent=1 // pred_check_branch
      %11 = sbr.rel (0) target = $region9
    $region8: #{wdepth_forward.1} parent=1 // pred_region
      _
    $region9: #{wdepth_forward.1} parent=1 // pred_fallthru
      _
    %p12 = scmp.eq.s32.totalorder 0, 0
    // Predicated region
    $region10: #{wdepth_forward.1} parent=1 // pred_check
      %p13 = pneg %p12
    $region11: #{wdepth_forward.1} parent=1 // pred_check_branch
      %15 = sbr.rel (%p13) target = $region13
    $region12: #{wdepth_forward.1} parent=1 // pred_region
      %16 = vst [vmem:[#allocation2] sm:$0xff] 0.0
      %17 = vst [vmem:[#allocation2 + $0x8] sm:$0xff] 0.0
      %18 = vst [vmem:[#allocation2 + $0x10] sm:$0xff] 0.0
      %19 = vst [vmem:[#allocation2 + $0x18] sm:$0xff] 0.0
      %20 = vst [vmem:[#allocation2 + $0x20] sm:$0xff] 0.0
      %vm21 = vcmask 0
      %22 = vst.msk [vmem:[#allocation3] sm:$0x1] %vm21, 0.0
    $region13: #{wdepth_forward.1} parent=1 // pred_fallthru
      _
    %v23 = vld [vmem:[#allocation2] sm:$0xff]
    %v24 = vld [vmem:[#allocation2 + $0x8] sm:$0xff]
    %v25 = vld [vmem:[#allocation2 + $0x10] sm:$0xff]
    %v26 = vld [vmem:[#allocation2 + $0x18] sm:$0xff]
    %v27 = vld [vmem:[#allocation2 + $0x20] sm:$0xff]
    %v28 = vld [vmem:[%s0] sm:$0xff]
    %v29 = vld [vmem:[%s0 + $0x8] sm:$0xff]
    %v30 = vld [vmem:[%s0 + $0x10] sm:$0xff]
    %v31 = vld [vmem:[%s0 + $0x18] sm:$0xff]
    %v32 = vld [vmem:[%s0 + $0x20] sm:$0xff]
    %v33 = vand.u32 2147483647, %v28
    %v34 = vand.u32 2147483647, %v29
    %v35 = vand.u32 2147483647, %v30
    %v36 = vand.u32 2147483647, %v31
    %v37 = vand.u32 2147483647, %v32
    %v38 = vadd.f32 %v33, 0.5
    %v39 = vadd.f32 %v34, 0.5
    %v40 = vadd.f32 %v35, 0.5
    %v41 = vadd.f32 %v36, 0.5
    %v42 = vadd.f32 %v37, 0.5
    %v43 = vlog2.pop %v38
    %v44 = vmul.f32 %v43, 0.6931472
    %v45 = vlog2.pop %v39
    %v46 = vmul.f32 %v45, 0.6931472
    %v47 = vlog2.pop %v40
    %v48 = vmul.f32 %v47, 0.6931472
    %v49 = vlog2.pop %v41
    %v50 = vmul.f32 %v49, 0.6931472
    %v51 = vlog2.pop %v42
    %v52 = vmul.f32 %v51, 0.6931472
    %v53 = vld [vmem:[%s1] sm:$0xff]
    %v54 = vld [vmem:[%s1 + $0x8] sm:$0xff]
    %v55 = vld [vmem:[%s1 + $0x10] sm:$0xff]
    %v56 = vld [vmem:[%s1 + $0x18] sm:$0xff]
    %v57 = vld [vmem:[%s1 + $0x20] sm:$0xff]
    %59 = vset.pattern.permute.xlu0 0
    %60 = vperm.xlu0 %59, %v53
    %v61 = vpop.permute.xlu0 %60
    %64 = vset.pattern.permute.xlu0 0
    %65 = vperm.xlu0 %64, %v54
    %v66 = vpop.permute.xlu0 %65
    %69 = vset.pattern.permute.xlu0 0
    %70 = vperm.xlu0 %69, %v55
    %v71 = vpop.permute.xlu0 %70
    %74 = vset.pattern.permute.xlu0 0
    %75 = vperm.xlu0 %74, %v56
    %v76 = vpop.permute.xlu0 %75
    %79 = vset.pattern.permute.xlu0 0
    %80 = vperm.xlu0 %79, %v57
    %v81 = vpop.permute.xlu0 %80
    %v83 = vmul.f32 %v44, %v61
    %v84 = vmul.f32 %v46, %v66
    %v85 = vmul.f32 %v48, %v71
    %v86 = vmul.f32 %v50, %v76
    %v87 = vmul.f32 %v52, %v81
    %v88 = vadd.f32 %v23, %v83
    %v89 = vadd.f32 %v24, %v84
    %v90 = vadd.f32 %v25, %v85
    %v91 = vadd.f32 %v26, %v86
    %v92 = vadd.f32 %v27, %v87
    %93 = vst [vmem:[#allocation2] sm:$0xff] %v88
    %94 = vst [vmem:[#allocation2 + $0x8] sm:$0xff] %v89
    %95 = vst [vmem:[#allocation2 + $0x10] sm:$0xff] %v90
    %96 = vst [vmem:[#allocation2 + $0x18] sm:$0xff] %v91
    %97 = vst [vmem:[#allocation2 + $0x20] sm:$0xff] %v92
    // Predicated region
    $region14: #{wdepth_forward.1} parent=1 // pred_check
      %p98 = pneg %p12
    $region15: #{wdepth_forward.1} parent=1 // pred_check_branch
      %100 = sbr.rel (%p98) target = $region17
    $region16: #{wdepth_forward.1} parent=1 // pred_region
      %v101 = vld [vmem:[#allocation3] sm:$0x1]
      %v102 = vld [vmem:[#allocation2] sm:$0xff]
      %v103 = vld [vmem:[#allocation2 + $0x8] sm:$0xff]
      %v104 = vld [vmem:[#allocation2 + $0x10] sm:$0xff]
      %v105 = vld [vmem:[#allocation2 + $0x18] sm:$0xff]
      %v106 = vld [vmem:[#allocation2 + $0x20] sm:$0xff]
      %v107 = vadd.f32 %v102, %v103
      %v108 = vadd.f32 %v107, %v104
      %v109 = vadd.f32 %v108, %v105
      %v110 = vadd.f32 %v109, %v106
      %111 = vadd.xlane.f32.xlu0 %v110
      %v112 = vpop.xlane.xlu0 %111
      %v113 = vrot.slane %v112, 4
      %v114 = vadd.f32 %v112, %v113
      %v115 = vrot.slane %v114, 2
      %v116 = vadd.f32 %v114, %v115
      %v117 = vrot.slane %v116, 1
      %v118 = vadd.f32 %v116, %v117
      %s119 = vtos %v118
      %v120 = vstv %s119
      %v121 = vadd.f32 %v101, %v120
      %vm122 = vcmask 0
      %123 = vst.msk [vmem:[#allocation3] sm:$0x1] %vm122, %v121
    $region17: #{wdepth_forward.1} parent=1 // pred_fallthru
      _
    // Predicated region
    $region18: #{wdepth_forward.1} parent=1 // pred_check
      _
    $region19: #{wdepth_forward.1} parent=1 // pred_check_branch
      %125 = sbr.rel (0) target = $region21
    $region20: #{wdepth_forward.1} parent=1 // pred_region
      %s127 = ssub.s32 16, 16
      %128 = vsyncadd [#allocation4], %s127
      %s130 = sshll.u32 [#allocation3], 4
      %s131 = int_to_ptr.vmem [resolvable:$true] %s130
      %133 = dma.vmem_to_hbm [thread:$0]  %s131, 16, %s2, [#allocation4]
    $region21: #{wdepth_forward.1} parent=1 // pred_fallthru
      _
    // Predicated region
    $region22: #{wdepth_forward.1} parent=1 // pred_check
      _
    $region23: #{wdepth_forward.1} parent=1 // pred_check_branch
      %135 = sbr.rel (0) target = $region25
    $region24: #{wdepth_forward.1} parent=1 // pred_region
      %136 = dma.done [#allocation4], 16
    $region25: #{wdepth_forward.1} parent=1 // pred_fallthru
      _
    %137 = vsyncpa [#allocation4], 1

</llo_original>
